<compile_context>
chip_gen: v5e
topology: v5e:2x2
jax: 0.10.0
libtpu: 0.0.40
codegen_flags: <defaults>
</compile_context>

<pallas_src>
import functools

import jax
import jax.numpy as jnp
from jax.experimental import pallas as pl
from jax.experimental.pallas import tpu as pltpu


def _round_up(x, m):
    return (x + m - 1) // m * m


def _cdiv(a, b):
    return (a + b - 1) // b


def _logits_adv_loss_kernel(logits_ref, targets_ref, out_ref, *, kappa, batch, tile_b):
    # logits_ref: [TILE_B, K] float, targets_ref: [TILE_B, 1] int32,
    # out_ref:    [1, 1] f32 per-tile partial sum of the per-sample losses.
    i = pl.program_id(0)
    # f32 compute keeps exact parity with the f32 reference (and the -10000.0 sentinel).
    x = logits_ref[...].astype(jnp.float32)                       # [TB, K]
    tgt = targets_ref[...]                                        # [TB, 1] int32
    tb, k = x.shape

    # One-hot mask via a row-broadcast lane iota (cheaper than a full (TB, K) iota).
    class_ids = jax.lax.broadcasted_iota(jnp.int32, (1, k), 1)    # [1, K]
    one_hot = class_ids == tgt                                    # [TB, K] bool (broadcast)

    # Single pass over the logits tile: both masked values from the same vregs.
    # real  = logit at the target class        (sum of one-hot-masked logits)
    # other = max over non-target classes      (target position forced to -10000.0)
    real = jnp.sum(jnp.where(one_hot, x, 0.0), axis=1, keepdims=True)              # [TB, 1]
    other = jnp.max(jnp.where(one_hot, jnp.float32(-10000.0), x),
                    axis=1, keepdims=True)                                          # [TB, 1]

    per_sample = jnp.maximum(other - real + jnp.float32(kappa), 0.0)                # [TB, 1]

    # Mask the ragged-tail / out-of-bounds rows BEFORE the reduction (there is no
    # wrapper-side padding any more), then emit a single per-tile partial sum.
    row_ids = i * tile_b + jax.lax.broadcasted_iota(jnp.int32, (tb, 1), 0)
    masked = jnp.where(row_ids < batch, per_sample, 0.0)                            # [TB, 1]
    out_ref[...] = jnp.sum(masked, axis=0, keepdims=True)                           # [1, 1]


def logits_adv_loss(logits, targets, kappa=0.0, *, force_pallas=False):
    """Pallas implementation of LogitsAdvLoss.forward(logits, targets)."""
    B, K = logits.shape
    targets_flat = targets.reshape(-1).astype(jnp.int32)
    itemsize = jnp.dtype(logits.dtype).itemsize

    # Tiny-input fast path: for shapes like (4, 10) the kernel-launch overhead
    # dominates entirely and the fused XLA expression is strictly faster.
    if not force_pallas and B * K * itemsize < (1 << 20):
        x = logits.astype(jnp.float32)
        one_hot = jax.lax.broadcasted_iota(jnp.int32, (1, K), 1) == targets_flat[:, None]
        real = jnp.sum(jnp.where(one_hot, x, 0.0), axis=1)
        other = jnp.max(jnp.where(one_hot, jnp.float32(-10000.0), x), axis=1)
        return jnp.mean(jnp.maximum(other - real + jnp.float32(kappa), 0.0))

    targets_2d = targets_flat.reshape(B, 1)

    # --- Tile sizing: pure byte budget ------------------------------------------------
    # VMEM pads the lane dim to 128; budget the block at f32 compute width so the
    # in-kernel f32 cast / intermediates are also covered. ~8 MiB per block means
    # 2 pipeline buffers = 16 MiB, under v7x's 32 MiB scoped default (and far under
    # v5e/v6e's 128 MiB physical VMEM); vmem_limit_bytes below raises v5e's 16 MiB
    # scoped default so the same tiling works on every generation.
    lanes_k = _round_up(K, 128)
    bytes_per_row_vmem = lanes_k * 4
    block_budget = 8 * 1024 * 1024
    TILE_B = max(8, min(_round_up(B, 8), (block_budget // bytes_per_row_vmem) // 8 * 8))
    # v7x has 2 TensorCores: if the whole batch fits in one tile, split it so the
    # "parallel" grid axis has at least 2 steps (a no-op on 1-TC v5e/v6e).
    if TILE_B >= B and B > 8:
        TILE_B = max(8, _round_up(_cdiv(B, 2), 8))
    num_tiles = _cdiv(B, TILE_B)   # ragged grid, NO jnp.pad HBM copy of the logits

    # TODO(synk): for vocab-sized K add a second ("arbitrary") grid axis over K with a
    # running max / masked-sum in VMEM scratch (TK multiple of 128); and for tiny K
    # (K << 128) pack multiple samples per 128-lane row to restore lane density.

    kernel = functools.partial(
        _logits_adv_loss_kernel, kappa=float(kappa), batch=B, tile_b=TILE_B)

    cost = pl.CostEstimate(
        flops=5 * B * K,
        transcendentals=0,
        bytes_accessed=B * K * itemsize + B * 4 + num_tiles * 4)

    partial_sums = pl.pallas_call(
        kernel,
        out_shape=jax.ShapeDtypeStruct((num_tiles, 1), jnp.float32),
        grid=(num_tiles,),
        in_specs=[
            pl.BlockSpec((TILE_B, K), lambda i: (i, 0)),   # logits tile
            pl.BlockSpec((TILE_B, 1), lambda i: (i, 0)),   # targets tile
        ],
        out_specs=pl.BlockSpec((1, 1), lambda i: (i, 0)),  # per-tile partial sum
        compiler_params=pltpu.CompilerParams(
            dimension_semantics=("parallel",),
            vmem_limit_bytes=32 * 1024 * 1024),
        cost_estimate=cost,
    )(logits, targets_2d)

    # Tiny final reduction (num_tiles scalars) in the wrapper keeps the grid axis
    # fully parallel across TensorCores.
    return jnp.sum(partial_sums) / jnp.float32(B)


def _reference(logits, targets, kappa=0.0):
    B, K = logits.shape
    one_hot = jax.nn.one_hot(targets.astype(jnp.int32), K, dtype=jnp.float32)
    logits = logits.astype(jnp.float32)
    real = jnp.sum(one_hot * logits, axis=1)
    other = jnp.max((1.0 - one_hot) * logits - one_hot * 10000.0, axis=1)
    return jnp.mean(jnp.maximum(other - real + kappa, 0.0))


if __name__ == "__main__":
    key = jax.random.PRNGKey(0)
    k1, k2, k3, k4, k5, k6 = jax.random.split(key, 6)

    # Case 1: small shape implied by the module (10-class logits). Forced through
    # the Pallas path so the kernel itself is exercised at small scale.
    B, K = 8, 10
    logits = jax.random.normal(k1, (B, K), dtype=jnp.float32) * 3.0
    targets = jax.random.randint(k2, (B,), 0, K, dtype=jnp.int32)
    kappa = 0.5
    loss = jax.block_until_ready(
        logits_adv_loss(logits, targets, kappa=kappa, force_pallas=True))
    ref = _reference(logits, targets, kappa=kappa)
    assert jnp.allclose(loss, ref, atol=1e-5, rtol=1e-5), (loss, ref)
    # Auto dispatch (tiny input -> fused-JAX fast path) must agree as well.
    loss_fast = jax.block_until_ready(logits_adv_loss(logits, targets, kappa=kappa))
    assert jnp.allclose(loss_fast, ref, atol=1e-5, rtol=1e-5), (loss_fast, ref)

    # Case 2: multi-tile grid with a ragged tail block, small K (forced Pallas path).
    B2, K2 = 1000, 64
    logits2 = jax.random.normal(k3, (B2, K2), dtype=jnp.float32) * 3.0
    targets2 = jax.random.randint(k4, (B2,), 0, K2, dtype=jnp.int32)
    loss2 = jax.block_until_ready(
        logits_adv_loss(logits2, targets2, kappa=0.0, force_pallas=True))
    ref2 = _reference(logits2, targets2, kappa=0.0)
    assert jnp.allclose(loss2, ref2, atol=1e-5, rtol=1e-5), (loss2, ref2)

    # Case 3: larger batch that takes the Pallas path via the auto size threshold,
    # multi-tile with a ragged tail (B not a multiple of TILE_B).
    B3, K3 = 3900, 128
    logits3 = jax.random.normal(k5, (B3, K3), dtype=jnp.float32) * 3.0
    targets3 = jax.random.randint(k6, (B3,), 0, K3, dtype=jnp.int32)
    loss3 = jax.block_until_ready(logits_adv_loss(logits3, targets3, kappa=0.25))
    ref3 = _reference(logits3, targets3, kappa=0.25)
    assert jnp.allclose(loss3, ref3, atol=1e-5, rtol=1e-5), (loss3, ref3)

    print("KERNEL_OK")
</pallas_src>

<mosaic_0001>
module attributes {stable_mosaic.version = 11 : i64} {
  func.func @_logits_adv_loss_kernel(%arg0: i32, %arg1: memref<8x10xf32, #tpu.memory_space<vmem>>, %arg2: memref<8x1xi32, #tpu.memory_space<vmem>>, %arg3: memref<1x1xf32, #tpu.memory_space<vmem>>) attributes {dimension_semantics = [#tpu.dimension_semantics<parallel>], iteration_bounds = array<i64: 1>, scalar_prefetch = 0 : i64, scratch_operands = 0 : i64, tpu.core_type = #tpu.core_type<tc>, window_params = [{transform_indices = @transform_0, window_bounds = array<i64: 8, 10>}, {transform_indices = @transform_1, window_bounds = array<i64: 8, 1>}, {transform_indices = @transform_2, window_bounds = array<i64: 1, 1>}]} {
    %c0 = arith.constant 0 : index
    %c0_0 = arith.constant 0 : index
    %0 = vector.load %arg1[%c0, %c0_0] : memref<8x10xf32, #tpu.memory_space<vmem>>, vector<8x10xf32>
    %c0_1 = arith.constant 0 : index
    %c0_2 = arith.constant 0 : index
    %1 = vector.load %arg2[%c0_1, %c0_2] : memref<8x1xi32, #tpu.memory_space<vmem>>, vector<8x1xi32>
    %2 = tpu.iota {dimensions = array<i32: 1>} : vector<1x10xi32>
    %3 = vector.broadcast %2 : vector<1x10xi32> to vector<8x10xi32>
    %4 = vector.broadcast %1 : vector<8x1xi32> to vector<8x10xi32>
    %5 = arith.cmpi eq, %3, %4 : vector<8x10xi32>
    %cst = arith.constant 0.000000e+00 : f32
    %6 = vector.broadcast %cst : f32 to vector<8x10xf32>
    %7 = arith.select %5, %0, %6 : vector<8x10xi1>, vector<8x10xf32>
    %cst_3 = arith.constant dense<0.000000e+00> : vector<8xf32>
    %8 = vector.multi_reduction <add>, %7, %cst_3 [1] : vector<8x10xf32> to vector<8xf32>
    %9 = vector.shape_cast %8 : vector<8xf32> to vector<8x1xf32>
    %cst_4 = arith.constant -1.000000e+04 : f32
    %10 = vector.broadcast %cst_4 : f32 to vector<8x10xf32>
    %11 = arith.select %5, %10, %0 : vector<8x10xi1>, vector<8x10xf32>
    %cst_5 = arith.constant dense<0xFF800000> : vector<8xf32>
    %12 = vector.multi_reduction <maximumf>, %11, %cst_5 [1] : vector<8x10xf32> to vector<8xf32>
    %13 = vector.shape_cast %12 : vector<8xf32> to vector<8x1xf32>
    %14 = arith.subf %13, %9 : vector<8x1xf32>
    %cst_6 = arith.constant 5.000000e-01 : f32
    %15 = vector.broadcast %cst_6 : f32 to vector<8x1xf32>
    %16 = arith.addf %14, %15 : vector<8x1xf32>
    %cst_7 = arith.constant 0.000000e+00 : f32
    %17 = vector.broadcast %cst_7 : f32 to vector<8x1xf32>
    %18 = arith.maximumf %16, %17 : vector<8x1xf32>
    %c8_i32 = arith.constant 8 : i32
    %19 = arith.muli %arg0, %c8_i32 : i32
    %20 = tpu.iota {dimensions = array<i32: 0>} : vector<8x1xi32>
    %21 = vector.broadcast %19 : i32 to vector<8x1xi32>
    %22 = arith.addi %21, %20 : vector<8x1xi32>
    %c8_i32_8 = arith.constant 8 : i32
    %23 = vector.broadcast %c8_i32_8 : i32 to vector<8x1xi32>
    %24 = arith.cmpi slt, %22, %23 : vector<8x1xi32>
    %cst_9 = arith.constant 0.000000e+00 : f32
    %25 = vector.broadcast %cst_9 : f32 to vector<8x1xf32>
    %26 = arith.select %24, %18, %25 : vector<8x1xi1>, vector<8x1xf32>
    %cst_10 = arith.constant dense<0.000000e+00> : vector<1xf32>
    %27 = vector.multi_reduction <add>, %26, %cst_10 [0] : vector<8x1xf32> to vector<1xf32>
    %28 = vector.shape_cast %27 : vector<1xf32> to vector<1x1xf32>
    %c0_11 = arith.constant 0 : index
    %c0_12 = arith.constant 0 : index
    %29 = vector.load %arg3[%c0_11, %c0_12] : memref<1x1xf32, #tpu.memory_space<vmem>>, vector<1x1xf32>
    tpu.vector_store %arg3[%c0_11, %c0_12], %28 {strides = array<i32>} : memref<1x1xf32, #tpu.memory_space<vmem>>, vector<1x1xf32>,
    return
  }
  func.func @transform_0(%arg0: i32) -> (i32, i32) {
    %c0_i32 = arith.constant 0 : i32
    %c0_i32_0 = arith.constant 0 : i32
    return %arg0, %c0_i32 : i32, i32
  }
  func.func @transform_1(%arg0: i32) -> (i32, i32) {
    %c0_i32 = arith.constant 0 : i32
    %c0_i32_0 = arith.constant 0 : i32
    return %arg0, %c0_i32 : i32, i32
  }
  func.func @transform_2(%arg0: i32) -> (i32, i32) {
    %c0_i32 = arith.constant 0 : i32
    %c0_i32_0 = arith.constant 0 : i32
    return %arg0, %c0_i32 : i32, i32
  }
}

</mosaic_0001>

<llo_original>
// kernel: tpu_custom_call.1
$region0: #{tpu_custom_call.1}
  #allocation0 [shape = 'u32[]', space=smem, size = 0x4, offset = 0x4, fixed_abs, tag = 'smem constant byte address 0x4 - core index']
  #allocation1 [shape = 'u32[72,128]{1,0:T(1,128)}', space=vmem, size = 0x9000, scoped, tag = 'internal scratch']
  %s0 = inlined_call_operand.vmem [shape: f32[8,10], index: 0, kind: input, shape index: {}]
  %s1 = inlined_call_operand.vmem [shape: s32[8,1], index: 1, kind: input, shape index: {}]
  %s2 = inlined_call_operand.hbm [shape: f32[1,1], index: 2, kind: output, shape index: {}]
  %s3 = sld [smem:[#allocation0]]
  $region18: #{tpu_custom_call.1} parent=0
    _
  %s5 = ssub.s32 1, %s3
  %s6 = scalar_select 0, %s5, %s3
  $region1: #{tpu_custom_call.1} parent=0
    #allocation2 [shape = 'u8[512]{0}', space=vmem, size = 0x400, scoped, tag = 'output window, operand 0, single buffered']
    #allocation3 [shape = 's32[1]{0}', space=sflag, size = 0x4, scoped, tag = 'scoped memory for tpu_custom_call.1']
    %7 = vsyncpa [#allocation3], 0
    // Predicated region
    $region2: #{tpu_custom_call.1} parent=1 // pred_check
      _
    $region3: #{tpu_custom_call.1} parent=1 // pred_check_branch
      %9 = sbr.rel (0) target = $region5
    $region4: #{tpu_custom_call.1} parent=1 // pred_region
      _
    $region5: #{tpu_custom_call.1} parent=1 // pred_fallthru
      _
    // Predicated region
    $region6: #{tpu_custom_call.1} parent=1 // pred_check
      _
    $region7: #{tpu_custom_call.1} parent=1 // pred_check_branch
      %11 = sbr.rel (0) target = $region9
    $region8: #{tpu_custom_call.1} parent=1 // pred_region
      _
    $region9: #{tpu_custom_call.1} parent=1 // pred_fallthru
      _
    %v12 = vld [vmem:[%s0] sm:$0xff]
    %v13 = vld [vmem:[%s1] sm:$0xff]
    %v14 = vlaneseq
    %v15 = vand.u32 %v14, 127
    %16 = vset.pattern.permute.xlu0 0
    %17 = vperm.xlu0 %16, %v13
    %v18 = vpop.permute.xlu0 %17
    %vm19 = vcmp.eq.s32.totalorder %v15, %v18
    %v20 = vsel %vm19, %v12, 0.0
    %vm21 = vcmask 80896
    %v22 = vsel %vm21, %v20, 0.0
    %23 = vadd.xlane.f32.xlu0 %v22
    %v24 = vpop.xlane.xlu0 %23
    %v25 = vsel %vm19, -10000.0, %v12
    %v26 = vsel %vm21, %v25, -inf
    %27 = vmax.xlane.f32.xlu0 %v26
    %v28 = vpop.xlane.xlu0 %27
    %v29 = vsub.f32 %v28, %v24
    %v30 = vadd.f32 %v29, 0.5
    %v31 = vmax.f32 %v30, 0.0
    %s32 = smul.u32 0, 8
    %v33 = vlaneseq
    %v34 = vshrl.u32 %v33, 7
    %v35 = vstv %s32
    %v36 = vadd.s32 %v35, %v34
    %vm37 = vcmp.lt.s32.totalorder %v36, 8
    %v38 = vsel %vm37, %v31, 0.0
    %v39 = vrot.slane %v38, 4
    %v40 = vadd.f32 %v38, %v39
    %v41 = vrot.slane %v40, 2
    %v42 = vadd.f32 %v40, %v41
    %v43 = vrot.slane %v42, 1
    %v44 = vadd.f32 %v42, %v43
    %vm45 = vcmask 0
    %46 = vst.msk [vmem:[#allocation2] sm:$0x1] %vm45, %v44
    // Predicated region
    $region10: #{tpu_custom_call.1} parent=1 // pred_check
      _
    $region11: #{tpu_custom_call.1} parent=1 // pred_check_branch
      %48 = sbr.rel (0) target = $region13
    $region12: #{tpu_custom_call.1} parent=1 // pred_region
      %50 = vsyncadd [#allocation3], 0
      %s52 = sshll.u32 [#allocation2], 4
      %s53 = int_to_ptr.vmem [resolvable:$true] %s52
      %s54 = sshll.u32 %s2, 4
      %s55 = int_to_ptr.hbm [resolvable:$true] %s54
      %57 = dma.vmem_to_hbm [thread:$0]  %s53, 16, %s55, [#allocation3]
    $region13: #{tpu_custom_call.1} parent=1 // pred_fallthru
      _
    // Predicated region
    $region14: #{tpu_custom_call.1} parent=1 // pred_check
      _
    $region15: #{tpu_custom_call.1} parent=1 // pred_check_branch
      %59 = sbr.rel (0) target = $region17
    $region16: #{tpu_custom_call.1} parent=1 // pred_region
      %61 = dma.done [#allocation3], 16
    $region17: #{tpu_custom_call.1} parent=1 // pred_fallthru
      _
    %62 = vsyncpa [#allocation3], 1

</llo_original>
